<compile_context>
chip_gen: v7x
topology: tpu7x:2x2x1
jax: 0.10.0
libtpu: 0.0.40
codegen_flags: <defaults>
</compile_context>

<pallas_src>
import math

import jax
import jax.numpy as jnp
from jax.experimental import pallas as pl
from jax.experimental.pallas import tpu as pltpu


N_IN = 36      # real flattened feature count
F_PAD = 64     # padded feature dim (lane-friendly, matches layer-1 width)
OUT_PAD = 128  # padded output lanes (lane-dense stores)


def _round_up(n, m):
    return ((n + m - 1) // m) * m


# ----------------------------- Pallas kernel ------------------------------
def dqn_mlp_kernel(
    x_ref,            # (TB, 64)    bf16  (features 36..63 are zero-padded)
    w1_ref, b1_ref,   # (64, 64)    bf16, (1, 64)  f32
    w2_ref, b2_ref,   # (64, 128)   bf16, (1, 128) f32
    w3_ref, b3_ref,   # (128, 64)   bf16, (1, 64)  f32
    w4_ref, b4_ref,   # (64, 128)   bf16, (1, 128) f32 (cols n_out..127 zero)
    o_ref,            # (TB, 128)   f32
):
    x = x_ref[...]

    # affine1 + relu  (f32 accumulation on the MXU, bf16 recast for next dot)
    h = jnp.dot(x, w1_ref[...], preferred_element_type=jnp.float32) + b1_ref[...]
    h = jnp.maximum(h, 0.0).astype(jnp.bfloat16)

    # affine2 + relu
    h = jnp.dot(h, w2_ref[...], preferred_element_type=jnp.float32) + b2_ref[...]
    h = jnp.maximum(h, 0.0).astype(jnp.bfloat16)

    # affine3 + relu
    h = jnp.dot(h, w3_ref[...], preferred_element_type=jnp.float32) + b3_ref[...]
    h = jnp.maximum(h, 0.0).astype(jnp.bfloat16)

    # affine4 (no activation), lane-dense 128-wide store
    h = jnp.dot(h, w4_ref[...], preferred_element_type=jnp.float32) + b4_ref[...]
    o_ref[...] = h.astype(o_ref.dtype)


# ------------------------------ wrapper -----------------------------------
def dqn_forward(x, params, *, block_b=256):
    """x: (B, ...) with prod(trailing dims) == 36. Returns (B, n_outputs) f32.

    block_b: target batch tile (256+ recommended for v6e/v7x, 128 for v5e).
    """
    B = x.shape[0]
    x2d = x.reshape(B, -1).astype(jnp.float32)   # torch.flatten(x, start_dim=1)
    assert x2d.shape[1] == N_IN, f"expected {N_IN} flattened features, got {x2d.shape[1]}"

    (w1, b1), (w2, b2), (w3, b3), (w4, b4) = params
    n_out = w4.shape[1]
    assert n_out <= OUT_PAD, f"n_outputs={n_out} exceeds padded lane width {OUT_PAD}"

    # Batch tile: multiple of 8 sublanes, capped at block_b; pad B up to it.
    TB = min(block_b, _round_up(B, 8))
    Bp = _round_up(B, TB)

    # Pad input: features 36 -> 64, batch B -> Bp; cast to bf16 for the MXU.
    xp = jnp.zeros((Bp, F_PAD), jnp.float32).at[:B, :N_IN].set(x2d)
    xp = xp.astype(jnp.bfloat16)

    # Pad w1 rows (36 -> 64) and w4/b4 output columns (n_out -> 128).
    w1p = jnp.zeros((F_PAD, 64), jnp.float32).at[:N_IN, :].set(w1).astype(jnp.bfloat16)
    w4p = jnp.zeros((64, OUT_PAD), jnp.float32).at[:, :n_out].set(w4).astype(jnp.bfloat16)
    b4p = jnp.zeros((1, OUT_PAD), jnp.float32).at[:, :n_out].set(b4)

    w2b = w2.astype(jnp.bfloat16)
    w3b = w3.astype(jnp.bfloat16)
    b1f = b1.astype(jnp.float32)
    b2f = b2.astype(jnp.float32)
    b3f = b3.astype(jnp.float32)

    grid = (Bp // TB,)

    def resident(shape):
        # Weight/bias stays at block (0, 0) for every grid step -> VMEM resident.
        return pl.BlockSpec(shape, lambda i: (0, 0))

    in_specs = [
        pl.BlockSpec((TB, F_PAD), lambda i: (i, 0)),   # x: tiled over batch
        resident(w1p.shape), resident(b1f.shape),
        resident(w2b.shape), resident(b2f.shape),
        resident(w3b.shape), resident(b3f.shape),
        resident(w4p.shape), resident(b4p.shape),
    ]
    out_spec = pl.BlockSpec((TB, OUT_PAD), lambda i: (i, 0))

    fn = pl.pallas_call(
        dqn_mlp_kernel,
        out_shape=jax.ShapeDtypeStruct((Bp, OUT_PAD), jnp.float32),
        grid=grid,
        in_specs=in_specs,
        out_specs=out_spec,
        compiler_params=pltpu.CompilerParams(
            dimension_semantics=("parallel",),   # batch axis: megacore / 2-TC shard
        ),
    )
    out = fn(xp, w1p, b1f, w2b, b2f, w3b, b3f, w4p, b4p)
    return out[:B, :n_out]


# ------------------------- deterministic params ---------------------------
def init_linear(key, fan_in, fan_out):
    """PyTorch nn.Linear default init: U(-1/sqrt(fan_in), 1/sqrt(fan_in))."""
    kw, kb = jax.random.split(key)
    bound = 1.0 / math.sqrt(fan_in)
    # Stored as (in, out) so the kernel computes x @ W  (== x @ W_pt.T).
    w = jax.random.uniform(kw, (fan_in, fan_out), jnp.float32, -bound, bound)
    b = jax.random.uniform(kb, (1, fan_out), jnp.float32, -bound, bound)
    return w, b


def make_params(key, n_outputs):
    k1, k2, k3, k4 = jax.random.split(key, 4)
    return (
        init_linear(k1, 36, 64),
        init_linear(k2, 64, 128),
        init_linear(k3, 128, 64),
        init_linear(k4, 64, n_outputs),
    )


# -------------------------- pure-JAX references ---------------------------
def dqn_reference_f32(x, params):
    h = x.reshape(x.shape[0], -1).astype(jnp.float32)
    (w1, b1), (w2, b2), (w3, b3), (w4, b4) = params
    h = jnp.maximum(h @ w1 + b1, 0.0)
    h = jnp.maximum(h @ w2 + b2, 0.0)
    h = jnp.maximum(h @ w3 + b3, 0.0)
    return h @ w4 + b4


def dqn_reference_bf16(x, params):
    """Mirrors the kernel's mixed precision (bf16 matmuls, f32 accum/bias)."""
    h = x.reshape(x.shape[0], -1).astype(jnp.float32)
    (w1, b1), (w2, b2), (w3, b3), (w4, b4) = params

    def layer(h, w, b, relu):
        y = jnp.dot(h.astype(jnp.bfloat16), w.astype(jnp.bfloat16),
                    preferred_element_type=jnp.float32) + b
        return jnp.maximum(y, 0.0) if relu else y

    h = layer(h, w1, b1, True)
    h = layer(h, w2, b2, True)
    h = layer(h, w3, b3, True)
    return layer(h, w4, b4, False)


if __name__ == "__main__":
    key = jax.random.PRNGKey(0)
    kx, kx2, kp = jax.random.split(key, 3)

    n_outputs = 12  # DQN action count (module only uses `outputs` for affine4)
    params = make_params(kp, n_outputs)

    # Small batch: observation (B, 6, 6) -> 36 flattened features.
    B = 8
    x = jax.random.normal(kx, (B, 6, 6), jnp.float32)
    out = jax.block_until_ready(dqn_forward(x, params))
    assert out.shape == (B, n_outputs)
    assert jnp.allclose(out, dqn_reference_bf16(x, params), atol=1e-3, rtol=1e-3)
    assert jnp.allclose(out, dqn_reference_f32(x, params), atol=5e-2, rtol=5e-2)

    # Exercise the multi-step batch-tiled path (grid > 1, batch padding).
    B2 = 300
    x2 = jax.random.normal(kx2, (B2, 6, 6), jnp.float32)
    out2 = jax.block_until_ready(dqn_forward(x2, params, block_b=256))
    assert out2.shape == (B2, n_outputs)
    assert jnp.allclose(out2, dqn_reference_bf16(x2, params), atol=1e-3, rtol=1e-3)
    assert jnp.allclose(out2, dqn_reference_f32(x2, params), atol=5e-2, rtol=5e-2)

    print("KERNEL_OK")
</pallas_src>

<mosaic_0001>
module attributes {stable_mosaic.version = 11 : i64} {
  func.func @dqn_mlp_kernel(%arg0: i32, %arg1: memref<8x64xbf16, #tpu.memory_space<vmem>>, %arg2: memref<64x64xbf16, #tpu.memory_space<vmem>>, %arg3: memref<1x64xf32, #tpu.memory_space<vmem>>, %arg4: memref<64x128xbf16, #tpu.memory_space<vmem>>, %arg5: memref<1x128xf32, #tpu.memory_space<vmem>>, %arg6: memref<128x64xbf16, #tpu.memory_space<vmem>>, %arg7: memref<1x64xf32, #tpu.memory_space<vmem>>, %arg8: memref<64x128xbf16, #tpu.memory_space<vmem>>, %arg9: memref<1x128xf32, #tpu.memory_space<vmem>>, %arg10: memref<8x128xf32, #tpu.memory_space<vmem>>) attributes {dimension_semantics = [#tpu.dimension_semantics<parallel>], iteration_bounds = array<i64: 1>, scalar_prefetch = 0 : i64, scratch_operands = 0 : i64, tpu.core_type = #tpu.core_type<tc>, window_params = [{transform_indices = @transform_0, window_bounds = array<i64: 8, 64>}, {pipeline_mode = #tpu.pipeline_mode<synchronous>, transform_indices = @transform_1, window_bounds = array<i64: 64, 64>}, {pipeline_mode = #tpu.pipeline_mode<synchronous>, transform_indices = @transform_2, window_bounds = array<i64: 1, 64>}, {pipeline_mode = #tpu.pipeline_mode<synchronous>, transform_indices = @transform_3, window_bounds = array<i64: 64, 128>}, {pipeline_mode = #tpu.pipeline_mode<synchronous>, transform_indices = @transform_4, window_bounds = array<i64: 1, 128>}, {pipeline_mode = #tpu.pipeline_mode<synchronous>, transform_indices = @transform_5, window_bounds = array<i64: 128, 64>}, {pipeline_mode = #tpu.pipeline_mode<synchronous>, transform_indices = @transform_6, window_bounds = array<i64: 1, 64>}, {pipeline_mode = #tpu.pipeline_mode<synchronous>, transform_indices = @transform_7, window_bounds = array<i64: 64, 128>}, {pipeline_mode = #tpu.pipeline_mode<synchronous>, transform_indices = @transform_8, window_bounds = array<i64: 1, 128>}, {transform_indices = @transform_9, window_bounds = array<i64: 8, 128>}]} {
    %c0 = arith.constant 0 : index
    %c0_0 = arith.constant 0 : index
    %0 = vector.load %arg1[%c0, %c0_0] : memref<8x64xbf16, #tpu.memory_space<vmem>>, vector<8x64xbf16>
    %c0_1 = arith.constant 0 : index
    %c0_2 = arith.constant 0 : index
    %1 = vector.load %arg2[%c0_1, %c0_2] : memref<64x64xbf16, #tpu.memory_space<vmem>>, vector<64x64xbf16>
    %cst = arith.constant dense<0.000000e+00> : vector<8x64xf32>
    %2 = tpu.matmul %0, %1, %cst {dimension_numbers = #tpu.dot_dimension_numbers<[1], [0], [0], [1], [0, 0, 1, 1], [], []>} : vector<8x64xbf16>, vector<64x64xbf16>, vector<8x64xf32> -> vector<8x64xf32>
    %c0_3 = arith.constant 0 : index
    %c0_4 = arith.constant 0 : index
    %3 = vector.load %arg3[%c0_3, %c0_4] : memref<1x64xf32, #tpu.memory_space<vmem>>, vector<1x64xf32>
    %4 = vector.broadcast %3 : vector<1x64xf32> to vector<8x64xf32>
    %5 = arith.addf %2, %4 : vector<8x64xf32>
    %cst_5 = arith.constant 0.000000e+00 : f32
    %6 = vector.broadcast %cst_5 : f32 to vector<8x64xf32>
    %7 = arith.maximumf %5, %6 : vector<8x64xf32>
    %8 = arith.truncf %7 : vector<8x64xf32> to vector<8x64xbf16>
    %c0_6 = arith.constant 0 : index
    %c0_7 = arith.constant 0 : index
    %9 = vector.load %arg4[%c0_6, %c0_7] : memref<64x128xbf16, #tpu.memory_space<vmem>>, vector<64x128xbf16>
    %cst_8 = arith.constant dense<0.000000e+00> : vector<8x128xf32>
    %10 = tpu.matmul %8, %9, %cst_8 {dimension_numbers = #tpu.dot_dimension_numbers<[1], [0], [0], [1], [0, 0, 1, 1], [], []>} : vector<8x64xbf16>, vector<64x128xbf16>, vector<8x128xf32> -> vector<8x128xf32>
    %c0_9 = arith.constant 0 : index
    %c0_10 = arith.constant 0 : index
    %11 = vector.load %arg5[%c0_9, %c0_10] : memref<1x128xf32, #tpu.memory_space<vmem>>, vector<1x128xf32>
    %12 = vector.broadcast %11 : vector<1x128xf32> to vector<8x128xf32>
    %13 = arith.addf %10, %12 : vector<8x128xf32>
    %cst_11 = arith.constant 0.000000e+00 : f32
    %14 = vector.broadcast %cst_11 : f32 to vector<8x128xf32>
    %15 = arith.maximumf %13, %14 : vector<8x128xf32>
    %16 = arith.truncf %15 : vector<8x128xf32> to vector<8x128xbf16>
    %c0_12 = arith.constant 0 : index
    %c0_13 = arith.constant 0 : index
    %17 = vector.load %arg6[%c0_12, %c0_13] : memref<128x64xbf16, #tpu.memory_space<vmem>>, vector<128x64xbf16>
    %cst_14 = arith.constant dense<0.000000e+00> : vector<8x64xf32>
    %18 = tpu.matmul %16, %17, %cst_14 {dimension_numbers = #tpu.dot_dimension_numbers<[1], [0], [0], [1], [0, 0, 1, 1], [], []>} : vector<8x128xbf16>, vector<128x64xbf16>, vector<8x64xf32> -> vector<8x64xf32>
    %c0_15 = arith.constant 0 : index
    %c0_16 = arith.constant 0 : index
    %19 = vector.load %arg7[%c0_15, %c0_16] : memref<1x64xf32, #tpu.memory_space<vmem>>, vector<1x64xf32>
    %20 = vector.broadcast %19 : vector<1x64xf32> to vector<8x64xf32>
    %21 = arith.addf %18, %20 : vector<8x64xf32>
    %cst_17 = arith.constant 0.000000e+00 : f32
    %22 = vector.broadcast %cst_17 : f32 to vector<8x64xf32>
    %23 = arith.maximumf %21, %22 : vector<8x64xf32>
    %24 = arith.truncf %23 : vector<8x64xf32> to vector<8x64xbf16>
    %c0_18 = arith.constant 0 : index
    %c0_19 = arith.constant 0 : index
    %25 = vector.load %arg8[%c0_18, %c0_19] : memref<64x128xbf16, #tpu.memory_space<vmem>>, vector<64x128xbf16>
    %cst_20 = arith.constant dense<0.000000e+00> : vector<8x128xf32>
    %26 = tpu.matmul %24, %25, %cst_20 {dimension_numbers = #tpu.dot_dimension_numbers<[1], [0], [0], [1], [0, 0, 1, 1], [], []>} : vector<8x64xbf16>, vector<64x128xbf16>, vector<8x128xf32> -> vector<8x128xf32>
    %c0_21 = arith.constant 0 : index
    %c0_22 = arith.constant 0 : index
    %27 = vector.load %arg9[%c0_21, %c0_22] : memref<1x128xf32, #tpu.memory_space<vmem>>, vector<1x128xf32>
    %28 = vector.broadcast %27 : vector<1x128xf32> to vector<8x128xf32>
    %29 = arith.addf %26, %28 : vector<8x128xf32>
    %c0_23 = arith.constant 0 : index
    %c0_24 = arith.constant 0 : index
    %30 = vector.load %arg10[%c0_23, %c0_24] : memref<8x128xf32, #tpu.memory_space<vmem>>, vector<8x128xf32>
    tpu.vector_store %arg10[%c0_23, %c0_24], %29 {strides = array<i32>} : memref<8x128xf32, #tpu.memory_space<vmem>>, vector<8x128xf32>,
    return
  }
  func.func @transform_0(%arg0: i32) -> (i32, i32) {
    %c0_i32 = arith.constant 0 : i32
    %c0_i32_0 = arith.constant 0 : i32
    return %arg0, %c0_i32 : i32, i32
  }
  func.func @transform_1(%arg0: i32) -> (i32, i32) {
    %c0_i32 = arith.constant 0 : i32
    %c0_i32_0 = arith.constant 0 : i32
    %c0_i32_1 = arith.constant 0 : i32
    return %c0_i32, %c0_i32_0 : i32, i32
  }
  func.func @transform_2(%arg0: i32) -> (i32, i32) {
    %c0_i32 = arith.constant 0 : i32
    %c0_i32_0 = arith.constant 0 : i32
    %c0_i32_1 = arith.constant 0 : i32
    return %c0_i32, %c0_i32_0 : i32, i32
  }
  func.func @transform_3(%arg0: i32) -> (i32, i32) {
    %c0_i32 = arith.constant 0 : i32
    %c0_i32_0 = arith.constant 0 : i32
    %c0_i32_1 = arith.constant 0 : i32
    return %c0_i32, %c0_i32_0 : i32, i32
  }
  func.func @transform_4(%arg0: i32) -> (i32, i32) {
    %c0_i32 = arith.constant 0 : i32
    %c0_i32_0 = arith.constant 0 : i32
    %c0_i32_1 = arith.constant 0 : i32
    return %c0_i32, %c0_i32_0 : i32, i32
  }
  func.func @transform_5(%arg0: i32) -> (i32, i32) {
    %c0_i32 = arith.constant 0 : i32
    %c0_i32_0 = arith.constant 0 : i32
    %c0_i32_1 = arith.constant 0 : i32
    return %c0_i32, %c0_i32_0 : i32, i32
  }
  func.func @transform_6(%arg0: i32) -> (i32, i32) {
    %c0_i32 = arith.constant 0 : i32
    %c0_i32_0 = arith.constant 0 : i32
    %c0_i32_1 = arith.constant 0 : i32
    return %c0_i32, %c0_i32_0 : i32, i32
  }
  func.func @transform_7(%arg0: i32) -> (i32, i32) {
    %c0_i32 = arith.constant 0 : i32
    %c0_i32_0 = arith.constant 0 : i32
    %c0_i32_1 = arith.constant 0 : i32
    return %c0_i32, %c0_i32_0 : i32, i32
  }
  func.func @transform_8(%arg0: i32) -> (i32, i32) {
    %c0_i32 = arith.constant 0 : i32
    %c0_i32_0 = arith.constant 0 : i32
    %c0_i32_1 = arith.constant 0 : i32
    return %c0_i32, %c0_i32_0 : i32, i32
  }
  func.func @transform_9(%arg0: i32) -> (i32, i32) {
    %c0_i32 = arith.constant 0 : i32
    %c0_i32_0 = arith.constant 0 : i32
    return %arg0, %c0_i32 : i32, i32
  }
}

</mosaic_0001>

<llo_original>
// kernel: tpu_custom_call.1
$region0: #{tpu_custom_call.1}
  #allocation0 [shape = 'u32[]', space=smem, size = 0x4, offset = 0x4, fixed_abs, tag = 'smem constant byte address 0x4 - core index']
  #allocation1 [shape = 'u32[144,128]{1,0:T(1,128)}', space=vmem, size = 0x12000, scoped, tag = 'internal scratch']
  %s0 = inlined_call_operand.hbm [shape: bf16[8,64], index: 0, kind: input, shape index: {}]
  %s1 = inlined_call_operand.vmem [shape: bf16[64,64], index: 1, kind: input, shape index: {}]
  %s2 = inlined_call_operand.vmem [shape: f32[1,64], index: 2, kind: input, shape index: {}]
  %s3 = inlined_call_operand.vmem [shape: bf16[64,128], index: 3, kind: input, shape index: {}]
  %s4 = inlined_call_operand.vmem [shape: f32[1,128], index: 4, kind: input, shape index: {}]
  %s5 = inlined_call_operand.vmem [shape: bf16[128,64], index: 5, kind: input, shape index: {}]
  %s6 = inlined_call_operand.vmem [shape: f32[1,64], index: 6, kind: input, shape index: {}]
  %s7 = inlined_call_operand.vmem [shape: bf16[64,128], index: 7, kind: input, shape index: {}]
  %s8 = inlined_call_operand.vmem [shape: f32[1,128], index: 8, kind: input, shape index: {}]
  %s9 = inlined_call_operand.hbm [shape: f32[8,128], index: 9, kind: output, shape index: {}]
  %s10 = sld [smem:[#allocation0]]
  $region50: #{tpu_custom_call.1} parent=0
    _
  %s12 = ssub.s32 1, %s10
  %s13 = scalar_select 0, %s12, %s10
  $region1: #{tpu_custom_call.1} parent=0
    #allocation2 [shape = 'u8[2048]{0}', space=vmem, size = 0x800, scoped, tag = 'input window, operand 0, single buffered']
    #allocation3 [shape = 's32[1]{0}', space=sflag, size = 0x4, scoped, tag = 'scoped memory for tpu_custom_call.1']
    #allocation4 [shape = 's32[1]{0}', space=sflag, size = 0x4, scoped, tag = 'scoped memory for tpu_custom_call.1']
    #allocation5 [shape = 'u8[4096]{0}', space=vmem, size = 0x1000, scoped, tag = 'output window, operand 0, single buffered']
    %14 = vsyncpa [#allocation3], 0
    %15 = vsyncpa [#allocation4], 0
    // Predicated region
    $region2: #{tpu_custom_call.1} parent=1 // pred_check
      _
    $region3: #{tpu_custom_call.1} parent=1 // pred_check_branch
      %17 = sbr.rel (0) target = $region5
    $region4: #{tpu_custom_call.1} parent=1 // pred_region
      %s19 = ssub.s32 64, 64
      %20 = vsyncadd [#allocation3], %s19
      %s22 = sshll.u32 [#allocation2], 4
      %s23 = int_to_ptr.vmem [resolvable:$true] %s22
      %25 = dma.hbm_to_vmem [thread:$0]  %s0, 64, %s23, [#allocation3]
    $region5: #{tpu_custom_call.1} parent=1 // pred_fallthru
      _
    // Predicated region
    $region6: #{tpu_custom_call.1} parent=1 // pred_check
      _
    $region7: #{tpu_custom_call.1} parent=1 // pred_check_branch
      %27 = sbr.rel (0) target = $region9
    $region8: #{tpu_custom_call.1} parent=1 // pred_region
      _
    $region9: #{tpu_custom_call.1} parent=1 // pred_fallthru
      _
    // Predicated region
    $region10: #{tpu_custom_call.1} parent=1 // pred_check
      _
    $region11: #{tpu_custom_call.1} parent=1 // pred_check_branch
      %29 = sbr.rel (0) target = $region13
    $region12: #{tpu_custom_call.1} parent=1 // pred_region
      _
    $region13: #{tpu_custom_call.1} parent=1 // pred_fallthru
      _
    // Predicated region
    $region14: #{tpu_custom_call.1} parent=1 // pred_check
      _
    $region15: #{tpu_custom_call.1} parent=1 // pred_check_branch
      %31 = sbr.rel (0) target = $region17
    $region16: #{tpu_custom_call.1} parent=1 // pred_region
      _
    $region17: #{tpu_custom_call.1} parent=1 // pred_fallthru
      _
    // Predicated region
    $region18: #{tpu_custom_call.1} parent=1 // pred_check
      _
    $region19: #{tpu_custom_call.1} parent=1 // pred_check_branch
      %33 = sbr.rel (0) target = $region21
    $region20: #{tpu_custom_call.1} parent=1 // pred_region
      _
    $region21: #{tpu_custom_call.1} parent=1 // pred_fallthru
      _
    // Predicated region
    $region22: #{tpu_custom_call.1} parent=1 // pred_check
      _
    $region23: #{tpu_custom_call.1} parent=1 // pred_check_branch
      %35 = sbr.rel (0) target = $region25
    $region24: #{tpu_custom_call.1} parent=1 // pred_region
      _
    $region25: #{tpu_custom_call.1} parent=1 // pred_fallthru
      _
    // Predicated region
    $region26: #{tpu_custom_call.1} parent=1 // pred_check
      _
    $region27: #{tpu_custom_call.1} parent=1 // pred_check_branch
      %37 = sbr.rel (0) target = $region29
    $region28: #{tpu_custom_call.1} parent=1 // pred_region
      _
    $region29: #{tpu_custom_call.1} parent=1 // pred_fallthru
      _
    // Predicated region
    $region30: #{tpu_custom_call.1} parent=1 // pred_check
      _
    $region31: #{tpu_custom_call.1} parent=1 // pred_check_branch
      %39 = sbr.rel (0) target = $region33
    $region32: #{tpu_custom_call.1} parent=1 // pred_region
      _
    $region33: #{tpu_custom_call.1} parent=1 // pred_fallthru
      _
    // Predicated region
    $region34: #{tpu_custom_call.1} parent=1 // pred_check
      _
    $region35: #{tpu_custom_call.1} parent=1 // pred_check_branch
      %41 = sbr.rel (0) target = $region37
    $region36: #{tpu_custom_call.1} parent=1 // pred_region
      _
    $region37: #{tpu_custom_call.1} parent=1 // pred_fallthru
      _
    // Predicated region
    $region38: #{tpu_custom_call.1} parent=1 // pred_check
      _
    $region39: #{tpu_custom_call.1} parent=1 // pred_check_branch
      %43 = sbr.rel (0) target = $region41
    $region40: #{tpu_custom_call.1} parent=1 // pred_region
      %44 = dma.done [#allocation3], 64
    $region41: #{tpu_custom_call.1} parent=1 // pred_fallthru
      _
    %v46 = vld [vmem:[#allocation2] sm:$0xf]
    %v47 = vld [vmem:[%s1] sm:$0xf]
    %v48 = vld [vmem:[%s1 + $0x4] sm:$0xf]
    %v49 = vld [vmem:[%s1 + $0x8] sm:$0xf]
    %v50 = vld [vmem:[%s1 + $0xc] sm:$0xf]
    %v51 = vld [vmem:[%s1 + $0x10] sm:$0xf]
    %v52 = vld [vmem:[%s1 + $0x14] sm:$0xf]
    %v53 = vld [vmem:[%s1 + $0x18] sm:$0xf]
    %v54 = vld [vmem:[%s1 + $0x1c] sm:$0xf]
    %v55 = vld [vmem:[%s2] sm:$0x1]
    %v57 = vlaneseq
    %v58 = vshrl.u32 %v57, 7
    %v59 = vsub.s32 0, %v58
    %v60 = vrot.slane %v55, %v59
    %v70 = vunpack.c.l.b16 %v47
    %v71 = vunpack.c.l.b16 %v48
    %v72 = vunpack.c.l.b16 %v49
    %v73 = vunpack.c.l.b16 %v50
    %v74 = vunpack.c.l.b16 %v51
    %v75 = vunpack.c.l.b16 %v52
    %v76 = vunpack.c.l.b16 %v53
    %v77 = vunpack.c.l.b16 %v54
    %v78 = vpack.c.b16 %v71, %v70
    %v79 = vpack.c.b16 %v73, %v72
    %v80 = vpack.c.b16 %v75, %v74
    %v81 = vpack.c.b16 %v77, %v76
    %vm86 = vcmask 523264
    %v88 = vsel %vm86, %v46, 0
    %90 = vmatprep.subr.bf16.mxu0 0
    %91 = vmatpush1.bf16.msra.mxu0 %v78
    %92 = vmatprep.subr.bf16.mxu0 0
    %93 = vmatpush1.bf16.msra.mxu0 %v79
    %94 = vmatprep.subr.bf16.mxu0 0
    %95 = vmatpush1.bf16.msra.mxu0 %v80
    %96 = vmatprep.subr.bf16.mxu0 0
    %97 = vmatpush1.bf16.msra.mxu0 %v81
    %98 = vmatprep.subr.bf16.mxu0 0
    %99 = vmatpush1.bf16.msra.mxu0 0
    %100 = vmatprep.subr.bf16.mxu0 0
    %101 = vmatpush1.bf16.msra.mxu0 0
    %102 = vmatprep.subr.bf16.mxu0 0
    %103 = vmatpush1.bf16.msra.mxu0 0
    %104 = vmatprep.subr.bf16.mxu0 0
    %105 = vmatpush1.bf16.msra.mxu0 0
    %106 = vmatprep.subr.bf16.mxu0 0
    %107 = vmatpush1.bf16.msra.mxu0 0
    %108 = vmatprep.subr.bf16.mxu0 0
    %109 = vmatpush1.bf16.msra.mxu0 0
    %110 = vmatprep.subr.bf16.mxu0 0
    %111 = vmatpush1.bf16.msra.mxu0 0
    %112 = vmatprep.subr.bf16.mxu0 0
    %113 = vmatpush1.bf16.msra.mxu0 0
    %114 = vmatprep.subr.bf16.mxu0 0
    %115 = vmatpush1.bf16.msra.mxu0 0
    %116 = vmatprep.subr.bf16.mxu0 0
    %117 = vmatpush1.bf16.msra.mxu0 0
    %118 = vmatprep.subr.bf16.mxu0 0
    %119 = vmatpush1.bf16.msra.mxu0 0
    %120 = vmatprep.subr.bf16.mxu0 0
    %121 = vmatpush1.bf16.msra.mxu0 0
    %122 = vmatprep.mubr.bf16.mxu0 0
    %123 = vmatmul.mubr.bf16.gmra.mrb[0].mxu0 %v88
    %v124 = vpop.f32.mrb[0].mxu0
    %v125 = vadd.f32 %v60, %v124
    %v126 = vpop.f32.mrb[0].mxu0
    %v127 = vpop.f32.mrb[0].mxu0
    %v128 = vpop.f32.mrb[0].mxu0
    %129 = vdwg.mxu0
    %v130 = vmax.f32 %v125, 0.0
    %v131 = vpack.c.bf16 %v130, %v130
    %v132 = vld [vmem:[%s3] sm:$0xf]
    %v133 = vld [vmem:[%s3 + $0x4] sm:$0xf]
    %v134 = vld [vmem:[%s3 + $0x8] sm:$0xf]
    %v135 = vld [vmem:[%s3 + $0xc] sm:$0xf]
    %v136 = vld [vmem:[%s3 + $0x10] sm:$0xf]
    %v137 = vld [vmem:[%s3 + $0x14] sm:$0xf]
    %v138 = vld [vmem:[%s3 + $0x18] sm:$0xf]
    %v139 = vld [vmem:[%s3 + $0x1c] sm:$0xf]
    %v140 = vld [vmem:[%s4] sm:$0x1]
    %v142 = vlaneseq
    %v143 = vshrl.u32 %v142, 7
    %v144 = vsub.s32 0, %v143
    %v145 = vrot.slane %v140, %v144
    %v155 = vunpack.c.l.b16 %v132
    %v156 = vunpack.c.l.b16 %v133
    %v157 = vunpack.c.l.b16 %v134
    %v158 = vunpack.c.l.b16 %v135
    %v159 = vunpack.c.l.b16 %v136
    %v160 = vunpack.c.l.b16 %v137
    %v161 = vunpack.c.l.b16 %v138
    %v162 = vunpack.c.l.b16 %v139
    %v163 = vpack.c.b16 %v156, %v155
    %v164 = vpack.c.b16 %v158, %v157
    %v165 = vpack.c.b16 %v160, %v159
    %v166 = vpack.c.b16 %v162, %v161
    %v172 = vsel %vm86, %v131, 0
    %174 = vmatprep.subr.bf16.mxu0 0
    %175 = vmatpush1.bf16.msra.mxu0 %v163
    %176 = vmatprep.subr.bf16.mxu0 0
    %177 = vmatpush1.bf16.msra.mxu0 %v164
    %178 = vmatprep.subr.bf16.mxu0 0
    %179 = vmatpush1.bf16.msra.mxu0 %v165
    %180 = vmatprep.subr.bf16.mxu0 0
    %181 = vmatpush1.bf16.msra.mxu0 %v166
    %182 = vmatprep.subr.bf16.mxu0 0
    %183 = vmatpush1.bf16.msra.mxu0 0
    %184 = vmatprep.subr.bf16.mxu0 0
    %185 = vmatpush1.bf16.msra.mxu0 0
    %186 = vmatprep.subr.bf16.mxu0 0
    %187 = vmatpush1.bf16.msra.mxu0 0
    %188 = vmatprep.subr.bf16.mxu0 0
    %189 = vmatpush1.bf16.msra.mxu0 0
    %190 = vmatprep.subr.bf16.mxu0 0
    %191 = vmatpush1.bf16.msra.mxu0 0
    %192 = vmatprep.subr.bf16.mxu0 0
    %193 = vmatpush1.bf16.msra.mxu0 0
    %194 = vmatprep.subr.bf16.mxu0 0
    %195 = vmatpush1.bf16.msra.mxu0 0
    %196 = vmatprep.subr.bf16.mxu0 0
    %197 = vmatpush1.bf16.msra.mxu0 0
    %198 = vmatprep.subr.bf16.mxu0 0
    %199 = vmatpush1.bf16.msra.mxu0 0
    %200 = vmatprep.subr.bf16.mxu0 0
    %201 = vmatpush1.bf16.msra.mxu0 0
    %202 = vmatprep.subr.bf16.mxu0 0
    %203 = vmatpush1.bf16.msra.mxu0 0
    %204 = vmatprep.subr.bf16.mxu0 0
    %205 = vmatpush1.bf16.msra.mxu0 0
    %206 = vmatprep.mubr.bf16.mxu0 0
    %207 = vmatmul.mubr.bf16.gmra.mrb[0].mxu0 %v172
    %v208 = vpop.f32.mrb[0].mxu0
    %v209 = vadd.f32 %v145, %v208
    %v210 = vpop.f32.mrb[0].mxu0
    %v211 = vpop.f32.mrb[0].mxu0
    %v212 = vpop.f32.mrb[0].mxu0
    %213 = vdwg.mxu0
    %v214 = vmax.f32 %v209, 0.0
    %v215 = vpack.c.bf16 %v214, %v214
    %v216 = vld [vmem:[%s5] sm:$0xf]
    %v217 = vld [vmem:[%s5 + $0x4] sm:$0xf]
    %v218 = vld [vmem:[%s5 + $0x8] sm:$0xf]
    %v219 = vld [vmem:[%s5 + $0xc] sm:$0xf]
    %v220 = vld [vmem:[%s5 + $0x10] sm:$0xf]
    %v221 = vld [vmem:[%s5 + $0x14] sm:$0xf]
    %v222 = vld [vmem:[%s5 + $0x18] sm:$0xf]
    %v223 = vld [vmem:[%s5 + $0x1c] sm:$0xf]
    %v224 = vld [vmem:[%s5 + $0x20] sm:$0xf]
    %v225 = vld [vmem:[%s5 + $0x24] sm:$0xf]
    %v226 = vld [vmem:[%s5 + $0x28] sm:$0xf]
    %v227 = vld [vmem:[%s5 + $0x2c] sm:$0xf]
    %v228 = vld [vmem:[%s5 + $0x30] sm:$0xf]
    %v229 = vld [vmem:[%s5 + $0x34] sm:$0xf]
    %v230 = vld [vmem:[%s5 + $0x38] sm:$0xf]
    %v231 = vld [vmem:[%s5 + $0x3c] sm:$0xf]
    %v232 = vld [vmem:[%s6] sm:$0x1]
    %v234 = vlaneseq
    %v235 = vshrl.u32 %v234, 7
    %v236 = vsub.s32 0, %v235
    %v237 = vrot.slane %v232, %v236
    %v255 = vunpack.c.l.b16 %v216
    %v256 = vunpack.c.l.b16 %v217
    %v257 = vunpack.c.l.b16 %v218
    %v258 = vunpack.c.l.b16 %v219
    %v259 = vunpack.c.l.b16 %v220
    %v260 = vunpack.c.l.b16 %v221
    %v261 = vunpack.c.l.b16 %v222
    %v262 = vunpack.c.l.b16 %v223
    %v263 = vunpack.c.l.b16 %v224
    %v264 = vunpack.c.l.b16 %v225
    %v265 = vunpack.c.l.b16 %v226
    %v266 = vunpack.c.l.b16 %v227
    %v267 = vunpack.c.l.b16 %v228
    %v268 = vunpack.c.l.b16 %v229
    %v269 = vunpack.c.l.b16 %v230
    %v270 = vunpack.c.l.b16 %v231
    %v271 = vpack.c.b16 %v256, %v255
    %v272 = vpack.c.b16 %v258, %v257
    %v273 = vpack.c.b16 %v260, %v259
    %v274 = vpack.c.b16 %v262, %v261
    %v275 = vpack.c.b16 %v264, %v263
    %v276 = vpack.c.b16 %v266, %v265
    %v277 = vpack.c.b16 %v268, %v267
    %v278 = vpack.c.b16 %v270, %v269
    %287 = vmatprep.subr.bf16.mxu0 0
    %288 = vmatpush1.bf16.msra.mxu0 %v271
    %289 = vmatprep.subr.bf16.mxu0 0
    %290 = vmatpush1.bf16.msra.mxu0 %v272
    %291 = vmatprep.subr.bf16.mxu0 0
    %292 = vmatpush1.bf16.msra.mxu0 %v273
    %293 = vmatprep.subr.bf16.mxu0 0
    %294 = vmatpush1.bf16.msra.mxu0 %v274
    %295 = vmatprep.subr.bf16.mxu0 0
    %296 = vmatpush1.bf16.msra.mxu0 %v275
    %297 = vmatprep.subr.bf16.mxu0 0
    %298 = vmatpush1.bf16.msra.mxu0 %v276
    %299 = vmatprep.subr.bf16.mxu0 0
    %300 = vmatpush1.bf16.msra.mxu0 %v277
    %301 = vmatprep.subr.bf16.mxu0 0
    %302 = vmatpush1.bf16.msra.mxu0 %v278
    %303 = vmatprep.subr.bf16.mxu0 0
    %304 = vmatpush1.bf16.msra.mxu0 0
    %305 = vmatprep.subr.bf16.mxu0 0
    %306 = vmatpush1.bf16.msra.mxu0 0
    %307 = vmatprep.subr.bf16.mxu0 0
    %308 = vmatpush1.bf16.msra.mxu0 0
    %309 = vmatprep.subr.bf16.mxu0 0
    %310 = vmatpush1.bf16.msra.mxu0 0
    %311 = vmatprep.subr.bf16.mxu0 0
    %312 = vmatpush1.bf16.msra.mxu0 0
    %313 = vmatprep.subr.bf16.mxu0 0
    %314 = vmatpush1.bf16.msra.mxu0 0
    %315 = vmatprep.subr.bf16.mxu0 0
    %316 = vmatpush1.bf16.msra.mxu0 0
    %317 = vmatprep.subr.bf16.mxu0 0
    %318 = vmatpush1.bf16.msra.mxu0 0
    %319 = vmatprep.mubr.bf16.mxu0 0
    %320 = vmatmul.mubr.bf16.gmra.mrb[0].mxu0 %v215
    %v321 = vpop.f32.mrb[0].mxu0
    %v322 = vadd.f32 %v237, %v321
    %v323 = vpop.f32.mrb[0].mxu0
    %v324 = vpop.f32.mrb[0].mxu0
    %v325 = vpop.f32.mrb[0].mxu0
    %326 = vdwg.mxu0
    %v327 = vmax.f32 %v322, 0.0
    %v328 = vpack.c.bf16 %v327, %v327
    %v329 = vld [vmem:[%s7] sm:$0xf]
    %v330 = vld [vmem:[%s7 + $0x4] sm:$0xf]
    %v331 = vld [vmem:[%s7 + $0x8] sm:$0xf]
    %v332 = vld [vmem:[%s7 + $0xc] sm:$0xf]
    %v333 = vld [vmem:[%s7 + $0x10] sm:$0xf]
    %v334 = vld [vmem:[%s7 + $0x14] sm:$0xf]
    %v335 = vld [vmem:[%s7 + $0x18] sm:$0xf]
    %v336 = vld [vmem:[%s7 + $0x1c] sm:$0xf]
    %v337 = vld [vmem:[%s8] sm:$0x1]
    %v339 = vlaneseq
    %v340 = vshrl.u32 %v339, 7
    %v341 = vsub.s32 0, %v340
    %v342 = vrot.slane %v337, %v341
    %v352 = vunpack.c.l.b16 %v329
    %v353 = vunpack.c.l.b16 %v330
    %v354 = vunpack.c.l.b16 %v331
    %v355 = vunpack.c.l.b16 %v332
    %v356 = vunpack.c.l.b16 %v333
    %v357 = vunpack.c.l.b16 %v334
    %v358 = vunpack.c.l.b16 %v335
    %v359 = vunpack.c.l.b16 %v336
    %v360 = vpack.c.b16 %v353, %v352
    %v361 = vpack.c.b16 %v355, %v354
    %v362 = vpack.c.b16 %v357, %v356
    %v363 = vpack.c.b16 %v359, %v358
    %v369 = vsel %vm86, %v328, 0
    %371 = vmatprep.subr.bf16.mxu0 0
    %372 = vmatpush1.bf16.msra.mxu0 %v360
    %373 = vmatprep.subr.bf16.mxu0 0
    %374 = vmatpush1.bf16.msra.mxu0 %v361
    %375 = vmatprep.subr.bf16.mxu0 0
    %376 = vmatpush1.bf16.msra.mxu0 %v362
    %377 = vmatprep.subr.bf16.mxu0 0
    %378 = vmatpush1.bf16.msra.mxu0 %v363
    %379 = vmatprep.subr.bf16.mxu0 0
    %380 = vmatpush1.bf16.msra.mxu0 0
    %381 = vmatprep.subr.bf16.mxu0 0
    %382 = vmatpush1.bf16.msra.mxu0 0
    %383 = vmatprep.subr.bf16.mxu0 0
    %384 = vmatpush1.bf16.msra.mxu0 0
    %385 = vmatprep.subr.bf16.mxu0 0
    %386 = vmatpush1.bf16.msra.mxu0 0
    %387 = vmatprep.subr.bf16.mxu0 0
    %388 = vmatpush1.bf16.msra.mxu0 0
    %389 = vmatprep.subr.bf16.mxu0 0
    %390 = vmatpush1.bf16.msra.mxu0 0
    %391 = vmatprep.subr.bf16.mxu0 0
    %392 = vmatpush1.bf16.msra.mxu0 0
    %393 = vmatprep.subr.bf16.mxu0 0
    %394 = vmatpush1.bf16.msra.mxu0 0
    %395 = vmatprep.subr.bf16.mxu0 0
    %396 = vmatpush1.bf16.msra.mxu0 0
    %397 = vmatprep.subr.bf16.mxu0 0
    %398 = vmatpush1.bf16.msra.mxu0 0
    %399 = vmatprep.subr.bf16.mxu0 0
    %400 = vmatpush1.bf16.msra.mxu0 0
    %401 = vmatprep.subr.bf16.mxu0 0
    %402 = vmatpush1.bf16.msra.mxu0 0
    %403 = vmatprep.mubr.bf16.mxu0 0
    %404 = vmatmul.mubr.bf16.gmra.mrb[0].mxu0 %v369
    %v405 = vpop.f32.mrb[0].mxu0
    %v406 = vadd.f32 %v342, %v405
    %v407 = vpop.f32.mrb[0].mxu0
    %v408 = vpop.f32.mrb[0].mxu0
    %v409 = vpop.f32.mrb[0].mxu0
    %410 = vdwg.mxu0
    %411 = vst [vmem:[#allocation5] sm:$0xff] %v406
    // Predicated region
    $region42: #{tpu_custom_call.1} parent=1 // pred_check
      _
    $region43: #{tpu_custom_call.1} parent=1 // pred_check_branch
      %413 = sbr.rel (0) target = $region45
    $region44: #{tpu_custom_call.1} parent=1 // pred_region
      %s415 = ssub.s32 128, 128
      %416 = vsyncadd [#allocation4], %s415
      %s418 = sshll.u32 [#allocation5], 4
      %s419 = int_to_ptr.vmem [resolvable:$true] %s418
      %421 = dma.vmem_to_hbm [thread:$0]  %s419, 128, %s9, [#allocation4]
    $region45: #{tpu_custom_call.1} parent=1 // pred_fallthru
      _
    // Predicated region
    $region46: #{tpu_custom_call.1} parent=1 // pred_check
      _
    $region47: #{tpu_custom_call.1} parent=1 // pred_check_branch
      %423 = sbr.rel (0) target = $region49
    $region48: #{tpu_custom_call.1} parent=1 // pred_region
      %424 = dma.done [#allocation4], 128
    $region49: #{tpu_custom_call.1} parent=1 // pred_fallthru
      _
    %425 = vsyncpa [#allocation3], 1
    %426 = vsyncpa [#allocation4], 1

</llo_original>
